<compile_context>
chip_gen: v7x
topology: tpu7x:2x2x1
jax: 0.10.0
libtpu: 0.0.40
codegen_flags: <defaults>
</compile_context>

<pallas_src>
import functools

import jax
import jax.numpy as jnp
from jax.experimental import pallas as pl
from jax.experimental.pallas import tpu as pltpu

_LANE = 128


def _round_up(n, m):
    return ((n + m - 1) // m) * m


def _pad_axis(x, axis, multiple):
    size = x.shape[axis]
    pad = (-size) % multiple
    if pad == 0:
        return x
    widths = [(0, 0)] * x.ndim
    widths[axis] = (0, pad)
    return jnp.pad(x, widths)


def _make_fused_kernel(meta):
    """meta: tuple of (n_dst, apply_relu_dropout) per layer (static)."""

    def kernel(*refs):
        # refs = (x_ref, per-layer (a_ref, w_ref, b_ref[, mask_ref])..., out_ref)
        x_ref = refs[0]
        out_ref = refs[-1]
        layer_refs = refs[1:-1]

        h = x_ref[...]  # f32 activations, feature dim lane-padded to 128
        idx = 0
        for (n_dst, relu_dropout) in meta:
            a_ref = layer_refs[idx]       # bf16 row-normalized adjacency [n_dst, n_src]
            w_ref = layer_refs[idx + 1]   # bf16 stacked weights [2*f_in_pad, f_out_pad]
            b_ref = layer_refs[idx + 2]   # f32 bias [1, f_out_pad]
            idx += 3

            h_bf = h.astype(jnp.bfloat16)
            # mean aggregation over neighbors as one MXU matmul: A_norm @ X
            h_neigh = jnp.dot(a_ref[...], h_bf, preferred_element_type=jnp.float32)
            # dst nodes are a prefix of src nodes -> free static slice of the value
            h_dst = h_bf[:n_dst, :]
            # merged self/neighbor projection: single MXU push with K = 2*f_in_pad
            cat = jnp.concatenate([h_dst, h_neigh.astype(jnp.bfloat16)], axis=-1)
            out = jnp.dot(cat, w_ref[...], preferred_element_type=jnp.float32)
            out = out + b_ref[...]

            if relu_dropout:
                mask_ref = layer_refs[idx]  # f32 pre-scaled dropout mask {0, 2}
                idx += 1
                out = jnp.maximum(out, 0.0) * mask_ref[...]
            h = out

        out_ref[...] = h.astype(out_ref.dtype)

    return kernel


@functools.partial(jax.jit, static_argnames=("meta", "out_channels"))
def _fused_forward(x_pad, inputs, meta, out_channels):
    """Run all SAGEConv layers in one Pallas call; slice the lane padding off."""
    n_dst_last = meta[-1][0]
    fo_pad = inputs[-1].shape[-1]  # last layer's bias width == padded out dim

    vmem = pl.BlockSpec(memory_space=pltpu.MemorySpace.VMEM)
    out = pl.pallas_call(
        _make_fused_kernel(meta),
        out_shape=jax.ShapeDtypeStruct((n_dst_last, fo_pad), jnp.float32),
        in_specs=[vmem] * (1 + len(inputs)),
        out_specs=vmem,
    )(x_pad, *inputs)
    return out[:, :out_channels]


class GraphSAGEPallas:
    """GraphSAGE with mean-aggregator SAGEConv layers; fused Pallas forward."""

    def __init__(self, in_channels, hidden_channels, out_channels, num_layers, key):
        dims = []
        c_in = in_channels
        for _ in range(num_layers - 1):
            dims.append((c_in, hidden_channels))
            c_in = hidden_channels
        dims.append((hidden_channels, out_channels))  # mirrors the reference __init__
        self.out_channels = out_channels

        self.layers = []
        for (fi, fo) in dims:
            key, k1, k2 = jax.random.split(key, 3)
            scale = 1.0 / jnp.sqrt(jnp.asarray(fi, jnp.float32))
            w_self = jax.random.uniform(k1, (fi, fo), jnp.float32, -scale, scale)
            w_neigh = jax.random.uniform(k2, (fi, fo), jnp.float32, -scale, scale)
            bias = jnp.zeros((fo,), jnp.float32)

            # Lane-pad feature dims to 128 and stack [W_self ; W_neigh] so the
            # self+neighbor projection is one lane-dense MXU matmul.
            fi_pad = _round_up(fi, _LANE)
            fo_pad = _round_up(fo, _LANE)
            ws = jnp.zeros((fi_pad, fo_pad), jnp.float32).at[:fi, :fo].set(w_self)
            wn = jnp.zeros((fi_pad, fo_pad), jnp.float32).at[:fi, :fo].set(w_neigh)
            w_stacked = jnp.concatenate([ws, wn], axis=0).astype(jnp.bfloat16)
            b = jnp.zeros((1, fo_pad), jnp.float32).at[0, :fo].set(bias)
            self.layers.append((w_stacked, b))

    def forward(self, blocks, x, key):
        """blocks: list of (a_norm [n_dst, n_src], n_dst); x: [n_src0, in_channels]."""
        n_layers = len(self.layers)
        x_pad = _pad_axis(x.astype(jnp.float32), 1, _LANE)

        inputs = []
        meta = []
        for i, ((w_stacked, b), (a_norm, n_dst)) in enumerate(zip(self.layers, blocks)):
            inputs += [a_norm.astype(jnp.bfloat16), w_stacked, b]
            relu_dropout = i != n_layers - 1
            if relu_dropout:
                key, sub = jax.random.split(key)
                fo_pad = w_stacked.shape[1]
                keep = jax.random.bernoulli(sub, 0.5, (int(n_dst), fo_pad))
                # pre-scaled dropout mask: keep / (1 - p), p = 0.5
                inputs.append(keep.astype(jnp.float32) * 2.0)
            meta.append((int(n_dst), relu_dropout))

        return _fused_forward(x_pad, tuple(inputs), tuple(meta), self.out_channels)


def _make_block(key, n_dst, n_src):
    """Dense random bipartite block graph with row-normalized (mean) adjacency."""
    adj = (jax.random.uniform(key, (n_dst, n_src)) < 0.3).astype(jnp.float32)
    # guarantee each dst node sees itself (dst i == src i by the prefix convention)
    adj = adj.at[jnp.arange(n_dst), jnp.arange(n_dst)].set(1.0)
    deg = jnp.sum(adj, axis=1, keepdims=True)
    a_norm = adj / jnp.maximum(deg, 1.0)
    return a_norm, n_dst


if __name__ == "__main__":
    key = jax.random.PRNGKey(0)
    k_feat, k_b0, k_b1, k_model, k_drop = jax.random.split(key, 5)

    in_channels, hidden_channels, out_channels, num_layers = 32, 32, 16, 2
    n_src0, n_dst0, n_dst1 = 64, 32, 16

    x = jax.random.normal(k_feat, (n_src0, in_channels), jnp.float32)
    blocks = [
        _make_block(k_b0, n_dst0, n_src0),  # layer 0: 64 src -> 32 dst
        _make_block(k_b1, n_dst1, n_dst0),  # layer 1: 32 src -> 16 dst
    ]

    model = GraphSAGEPallas(in_channels, hidden_channels, out_channels, num_layers, k_model)
    out = model.forward(blocks, x, k_drop)
    out = jax.block_until_ready(out)
    assert out.shape == (n_dst1, out_channels), out.shape
    print("KERNEL_OK")
</pallas_src>

<mosaic_0001>
module attributes {stable_mosaic.version = 11 : i64} {
  func.func @kernel(%arg0: memref<64x128xf32, #tpu.memory_space<vmem>>, %arg1: memref<32x64xbf16, #tpu.memory_space<vmem>>, %arg2: memref<256x128xbf16, #tpu.memory_space<vmem>>, %arg3: memref<1x128xf32, #tpu.memory_space<vmem>>, %arg4: memref<32x128xf32, #tpu.memory_space<vmem>>, %arg5: memref<16x32xbf16, #tpu.memory_space<vmem>>, %arg6: memref<256x128xbf16, #tpu.memory_space<vmem>>, %arg7: memref<1x128xf32, #tpu.memory_space<vmem>>, %arg8: memref<16x128xf32, #tpu.memory_space<vmem>>) attributes {dimension_semantics = [], scalar_prefetch = 0 : i64, scratch_operands = 0 : i64, tpu.core_type = #tpu.core_type<tc>} {
    %c0 = arith.constant 0 : index
    %c0_0 = arith.constant 0 : index
    %0 = vector.load %arg0[%c0, %c0_0] : memref<64x128xf32, #tpu.memory_space<vmem>>, vector<64x128xf32>
    %1 = arith.truncf %0 : vector<64x128xf32> to vector<64x128xbf16>
    %c0_1 = arith.constant 0 : index
    %c0_2 = arith.constant 0 : index
    %2 = vector.load %arg1[%c0_1, %c0_2] : memref<32x64xbf16, #tpu.memory_space<vmem>>, vector<32x64xbf16>
    %cst = arith.constant dense<0.000000e+00> : vector<32x128xf32>
    %3 = tpu.matmul %2, %1, %cst {dimension_numbers = #tpu.dot_dimension_numbers<[1], [0], [0], [1], [0, 0, 1, 1], [], []>} : vector<32x64xbf16>, vector<64x128xbf16>, vector<32x128xf32> -> vector<32x128xf32>
    %4 = vector.extract_strided_slice %1 {offsets = [0, 0], sizes = [32, 128], strides = [1, 1]} : vector<64x128xbf16> to vector<32x128xbf16>
    %5 = arith.truncf %3 : vector<32x128xf32> to vector<32x128xbf16>
    %6 = tpu.concatenate %4, %5 in 1 : vector<32x128xbf16>, vector<32x128xbf16> -> vector<32x256xbf16>
    %c0_3 = arith.constant 0 : index
    %c0_4 = arith.constant 0 : index
    %7 = vector.load %arg2[%c0_3, %c0_4] : memref<256x128xbf16, #tpu.memory_space<vmem>>, vector<256x128xbf16>
    %cst_5 = arith.constant dense<0.000000e+00> : vector<32x128xf32>
    %8 = tpu.matmul %6, %7, %cst_5 {dimension_numbers = #tpu.dot_dimension_numbers<[1], [0], [0], [1], [0, 0, 1, 1], [], []>} : vector<32x256xbf16>, vector<256x128xbf16>, vector<32x128xf32> -> vector<32x128xf32>
    %c0_6 = arith.constant 0 : index
    %c0_7 = arith.constant 0 : index
    %9 = vector.load %arg3[%c0_6, %c0_7] : memref<1x128xf32, #tpu.memory_space<vmem>>, vector<1x128xf32>
    %10 = vector.broadcast %9 : vector<1x128xf32> to vector<32x128xf32>
    %11 = arith.addf %8, %10 : vector<32x128xf32>
    %cst_8 = arith.constant 0.000000e+00 : f32
    %12 = vector.broadcast %cst_8 : f32 to vector<32x128xf32>
    %13 = arith.maximumf %11, %12 : vector<32x128xf32>
    %c0_9 = arith.constant 0 : index
    %c0_10 = arith.constant 0 : index
    %14 = vector.load %arg4[%c0_9, %c0_10] : memref<32x128xf32, #tpu.memory_space<vmem>>, vector<32x128xf32>
    %15 = arith.mulf %13, %14 : vector<32x128xf32>
    %16 = arith.truncf %15 : vector<32x128xf32> to vector<32x128xbf16>
    %c0_11 = arith.constant 0 : index
    %c0_12 = arith.constant 0 : index
    %17 = vector.load %arg5[%c0_11, %c0_12] : memref<16x32xbf16, #tpu.memory_space<vmem>>, vector<16x32xbf16>
    %cst_13 = arith.constant dense<0.000000e+00> : vector<16x128xf32>
    %18 = tpu.matmul %17, %16, %cst_13 {dimension_numbers = #tpu.dot_dimension_numbers<[1], [0], [0], [1], [0, 0, 1, 1], [], []>} : vector<16x32xbf16>, vector<32x128xbf16>, vector<16x128xf32> -> vector<16x128xf32>
    %19 = vector.extract_strided_slice %16 {offsets = [0, 0], sizes = [16, 128], strides = [1, 1]} : vector<32x128xbf16> to vector<16x128xbf16>
    %20 = arith.truncf %18 : vector<16x128xf32> to vector<16x128xbf16>
    %21 = tpu.concatenate %19, %20 in 1 : vector<16x128xbf16>, vector<16x128xbf16> -> vector<16x256xbf16>
    %c0_14 = arith.constant 0 : index
    %c0_15 = arith.constant 0 : index
    %22 = vector.load %arg6[%c0_14, %c0_15] : memref<256x128xbf16, #tpu.memory_space<vmem>>, vector<256x128xbf16>
    %cst_16 = arith.constant dense<0.000000e+00> : vector<16x128xf32>
    %23 = tpu.matmul %21, %22, %cst_16 {dimension_numbers = #tpu.dot_dimension_numbers<[1], [0], [0], [1], [0, 0, 1, 1], [], []>} : vector<16x256xbf16>, vector<256x128xbf16>, vector<16x128xf32> -> vector<16x128xf32>
    %c0_17 = arith.constant 0 : index
    %c0_18 = arith.constant 0 : index
    %24 = vector.load %arg7[%c0_17, %c0_18] : memref<1x128xf32, #tpu.memory_space<vmem>>, vector<1x128xf32>
    %25 = vector.broadcast %24 : vector<1x128xf32> to vector<16x128xf32>
    %26 = arith.addf %23, %25 : vector<16x128xf32>
    %c0_19 = arith.constant 0 : index
    %c0_20 = arith.constant 0 : index
    %27 = vector.load %arg8[%c0_19, %c0_20] : memref<16x128xf32, #tpu.memory_space<vmem>>, vector<16x128xf32>
    tpu.vector_store %arg8[%c0_19, %c0_20], %26 {strides = array<i32>} : memref<16x128xf32, #tpu.memory_space<vmem>>, vector<16x128xf32>,
    return
  }
}

</mosaic_0001>

<llo_original>
// kernel: _fused_forward.1
$region0: #{_fused_forward.1}
  #allocation0 [shape = 'u32[]', space=smem, size = 0x4, offset = 0x4, fixed_abs, tag = 'smem constant byte address 0x4 - core index']
  #allocation1 [shape = 'u32[144,128]{1,0:T(1,128)}', space=vmem, size = 0x12000, scoped, tag = 'internal scratch']
  %s0 = inlined_call_operand.hbm [shape: f32[64,128], index: 0, kind: input, shape index: {}]
  %s1 = inlined_call_operand.hbm [shape: bf16[32,64], index: 1, kind: input, shape index: {}]
  %s2 = inlined_call_operand.hbm [shape: bf16[256,128], index: 2, kind: input, shape index: {}]
  %s3 = inlined_call_operand.vmem [shape: f32[1,128], index: 3, kind: input, shape index: {}]
  %s4 = inlined_call_operand.hbm [shape: f32[32,128], index: 4, kind: input, shape index: {}]
  %s5 = inlined_call_operand.vmem [shape: bf16[16,32], index: 5, kind: input, shape index: {}]
  %s6 = inlined_call_operand.hbm [shape: bf16[256,128], index: 6, kind: input, shape index: {}]
  %s7 = inlined_call_operand.vmem [shape: f32[1,128], index: 7, kind: input, shape index: {}]
  %s8 = inlined_call_operand.hbm [shape: f32[16,128], index: 8, kind: output, shape index: {}]
  %s9 = sld [smem:[#allocation0]]
  $region62: #{_fused_forward.1} parent=0
    _
  %s11 = ssub.s32 1, %s9
  %s12 = scalar_select 0, %s11, %s9
  $region1: #{_fused_forward.1} parent=0
    #allocation2 [shape = 'u8[32768]{0}', space=vmem, size = 0x8000, scoped, tag = 'input window, operand 0, single buffered']
    #allocation3 [shape = 's32[1]{0}', space=sflag, size = 0x4, scoped, tag = 'scoped memory for _fused_forward.1']
    #allocation4 [shape = 's32[1]{0}', space=sflag, size = 0x4, scoped, tag = 'scoped memory for _fused_forward.1']
    #allocation5 [shape = 'u8[8192]{0}', space=vmem, size = 0x2000, scoped, tag = 'input window, operand 1, single buffered']
    #allocation6 [shape = 's32[1]{0}', space=sflag, size = 0x4, scoped, tag = 'scoped memory for _fused_forward.1']
    #allocation7 [shape = 'u8[65536]{0}', space=vmem, size = 0x10000, scoped, tag = 'input window, operand 2, single buffered']
    #allocation8 [shape = 'u8[16384]{0}', space=vmem, size = 0x4000, scoped, tag = 'input window, operand 4, single buffered']
    #allocation9 [shape = 's32[1]{0}', space=sflag, size = 0x4, scoped, tag = 'scoped memory for _fused_forward.1']
    #allocation10 [shape = 'u8[65536]{0}', space=vmem, size = 0x10000, scoped, tag = 'input window, operand 6, single buffered']
    #allocation11 [shape = 'u8[8192]{0}', space=vmem, size = 0x2000, scoped, tag = 'output window, operand 0, single buffered']
    %13 = vsyncpa [#allocation3], 0
    %14 = vsyncpa [#allocation6], 0
    %15 = vsyncpa [#allocation9], 0
    %16 = vsyncpa [#allocation4], 0
    // Predicated region
    $region2: #{_fused_forward.1} parent=1 // pred_check
      _
    $region3: #{_fused_forward.1} parent=1 // pred_check_branch
      %18 = sbr.rel (0) target = $region5
    $region4: #{_fused_forward.1} parent=1 // pred_region
      %s20 = ssub.s32 1024, 1024
      %21 = vsyncadd [#allocation3], %s20
      %s22 = sshll.u32 [#allocation2], 4
      %s23 = int_to_ptr.vmem [resolvable:$true] %s22
      %28 = dma.hbm_to_vmem [thread:$0]  %s0, 1024, %s23, [#allocation3], 128, 128, 8
    $region5: #{_fused_forward.1} parent=1 // pred_fallthru
      _
    // Predicated region
    $region6: #{_fused_forward.1} parent=1 // pred_check
      _
    $region7: #{_fused_forward.1} parent=1 // pred_check_branch
      %30 = sbr.rel (0) target = $region9
    $region8: #{_fused_forward.1} parent=1 // pred_region
      %s32 = ssub.s32 256, 256
      %33 = vsyncadd [#allocation6], %s32
      %s34 = sshll.u32 [#allocation5], 4
      %s35 = int_to_ptr.vmem [resolvable:$true] %s34
      %40 = dma.hbm_to_vmem [thread:$0]  %s1, 256, %s35, [#allocation6], 64, 64, 4
    $region9: #{_fused_forward.1} parent=1 // pred_fallthru
      _
    // Predicated region
    $region10: #{_fused_forward.1} parent=1 // pred_check
      _
    $region11: #{_fused_forward.1} parent=1 // pred_check_branch
      %42 = sbr.rel (0) target = $region13
    $region12: #{_fused_forward.1} parent=1 // pred_region
      %s44 = ssub.s32 2048, 2048
      %45 = vsyncadd [#allocation6], %s44
      %s46 = sshll.u32 [#allocation7], 4
      %s47 = int_to_ptr.vmem [resolvable:$true] %s46
      %52 = dma.hbm_to_vmem [thread:$0]  %s2, 2048, %s47, [#allocation6], 64, 64, 4
    $region13: #{_fused_forward.1} parent=1 // pred_fallthru
      _
    // Predicated region
    $region14: #{_fused_forward.1} parent=1 // pred_check
      _
    $region15: #{_fused_forward.1} parent=1 // pred_check_branch
      %54 = sbr.rel (0) target = $region17
    $region16: #{_fused_forward.1} parent=1 // pred_region
      _
    $region17: #{_fused_forward.1} parent=1 // pred_fallthru
      _
    // Predicated region
    $region18: #{_fused_forward.1} parent=1 // pred_check
      _
    $region19: #{_fused_forward.1} parent=1 // pred_check_branch
      %56 = sbr.rel (0) target = $region21
    $region20: #{_fused_forward.1} parent=1 // pred_region
      %s58 = ssub.s32 512, 512
      %59 = vsyncadd [#allocation9], %s58
      %s60 = sshll.u32 [#allocation8], 4
      %s61 = int_to_ptr.vmem [resolvable:$true] %s60
      %66 = dma.hbm_to_vmem [thread:$0]  %s4, 512, %s61, [#allocation9], 128, 128, 8
    $region21: #{_fused_forward.1} parent=1 // pred_fallthru
      _
    // Predicated region
    $region22: #{_fused_forward.1} parent=1 // pred_check
      _
    $region23: #{_fused_forward.1} parent=1 // pred_check_branch
      %68 = sbr.rel (0) target = $region25
    $region24: #{_fused_forward.1} parent=1 // pred_region
      _
    $region25: #{_fused_forward.1} parent=1 // pred_fallthru
      _
    // Predicated region
    $region26: #{_fused_forward.1} parent=1 // pred_check
      _
    $region27: #{_fused_forward.1} parent=1 // pred_check_branch
      %70 = sbr.rel (0) target = $region29
    $region28: #{_fused_forward.1} parent=1 // pred_region
      %s72 = ssub.s32 2048, 2048
      %73 = vsyncadd [#allocation9], %s72
      %s74 = sshll.u32 [#allocation10], 4
      %s75 = int_to_ptr.vmem [resolvable:$true] %s74
      %80 = dma.hbm_to_vmem [thread:$0]  %s6, 2048, %s75, [#allocation9], 64, 64, 4
    $region29: #{_fused_forward.1} parent=1 // pred_fallthru
      _
    // Predicated region
    $region30: #{_fused_forward.1} parent=1 // pred_check
      _
    $region31: #{_fused_forward.1} parent=1 // pred_check_branch
      %82 = sbr.rel (0) target = $region33
    $region32: #{_fused_forward.1} parent=1 // pred_region
      _
    $region33: #{_fused_forward.1} parent=1 // pred_fallthru
      _
    // Predicated region
    $region34: #{_fused_forward.1} parent=1 // pred_check
      _
    $region35: #{_fused_forward.1} parent=1 // pred_check_branch
      %84 = sbr.rel (0) target = $region37
    $region36: #{_fused_forward.1} parent=1 // pred_region
      %85 = dma.done [#allocation3], 1024
    $region37: #{_fused_forward.1} parent=1 // pred_fallthru
      _
    // Predicated region
    $region38: #{_fused_forward.1} parent=1 // pred_check
      _
    $region39: #{_fused_forward.1} parent=1 // pred_check_branch
      %87 = sbr.rel (0) target = $region41
    $region40: #{_fused_forward.1} parent=1 // pred_region
      %88 = dma.done [#allocation6], 256
    $region41: #{_fused_forward.1} parent=1 // pred_fallthru
      _
    // Predicated region
    $region42: #{_fused_forward.1} parent=1 // pred_check
      _
    $region43: #{_fused_forward.1} parent=1 // pred_check_branch
      %90 = sbr.rel (0) target = $region45
    $region44: #{_fused_forward.1} parent=1 // pred_region
      %91 = dma.done [#allocation6], 2048
    $region45: #{_fused_forward.1} parent=1 // pred_fallthru
      _
    // Predicated region
    $region46: #{_fused_forward.1} parent=1 // pred_check
      _
    $region47: #{_fused_forward.1} parent=1 // pred_check_branch
      %93 = sbr.rel (0) target = $region49
    $region48: #{_fused_forward.1} parent=1 // pred_region
      %94 = dma.done [#allocation9], 512
    $region49: #{_fused_forward.1} parent=1 // pred_fallthru
      _
    // Predicated region
    $region50: #{_fused_forward.1} parent=1 // pred_check
      _
    $region51: #{_fused_forward.1} parent=1 // pred_check_branch
      %96 = sbr.rel (0) target = $region53
    $region52: #{_fused_forward.1} parent=1 // pred_region
      %97 = dma.done [#allocation9], 2048
    $region53: #{_fused_forward.1} parent=1 // pred_fallthru
      _
    %v99 = vld [vmem:[#allocation2] sm:$0xff]
    %v100 = vld [vmem:[#allocation2 + $0x8] sm:$0xff]
    %v101 = vld [vmem:[#allocation2 + $0x10] sm:$0xff]
    %v102 = vld [vmem:[#allocation2 + $0x18] sm:$0xff]
    %v103 = vld [vmem:[#allocation2 + $0x20] sm:$0xff]
    %v104 = vld [vmem:[#allocation2 + $0x28] sm:$0xff]
    %v105 = vld [vmem:[#allocation2 + $0x30] sm:$0xff]
    %v106 = vld [vmem:[#allocation2 + $0x38] sm:$0xff]
    %v107 = vpack.c.bf16 %v100, %v99
    %v108 = vpack.c.bf16 %v102, %v101
    %v109 = vpack.c.bf16 %v104, %v103
    %v110 = vpack.c.bf16 %v106, %v105
    %v111 = vld [vmem:[#allocation5] sm:$0xf]
    %v112 = vld [vmem:[#allocation5 + $0x4] sm:$0xf]
    %v113 = vld [vmem:[#allocation5 + $0x8] sm:$0xf]
    %v114 = vld [vmem:[#allocation5 + $0xc] sm:$0xf]
    %v119 = vunpack.c.l.b16 %v111
    %v120 = vunpack.c.l.b16 %v112
    %v121 = vunpack.c.l.b16 %v113
    %v122 = vunpack.c.l.b16 %v114
    %v123 = vpack.c.b16 %v120, %v119
    %v124 = vpack.c.b16 %v122, %v121
    %vm125 = vcmask 523264
    %v127 = vsel %vm125, %v123, 0
    %v130 = vsel %vm125, %v124, 0
    %132 = vmatprep.subr.bf16.mxu0 0
    %133 = vmatpush1.bf16.msra.mxu0 %v107
    %134 = vmatprep.subr.bf16.mxu0 0
    %135 = vmatpush1.bf16.msra.mxu0 %v108
    %136 = vmatprep.subr.bf16.mxu0 0
    %137 = vmatpush1.bf16.msra.mxu0 %v109
    %138 = vmatprep.subr.bf16.mxu0 0
    %139 = vmatpush1.bf16.msra.mxu0 %v110
    %140 = vmatprep.subr.bf16.mxu0 0
    %141 = vmatpush1.bf16.msra.mxu0 0
    %142 = vmatprep.subr.bf16.mxu0 0
    %143 = vmatpush1.bf16.msra.mxu0 0
    %144 = vmatprep.subr.bf16.mxu0 0
    %145 = vmatpush1.bf16.msra.mxu0 0
    %146 = vmatprep.subr.bf16.mxu0 0
    %147 = vmatpush1.bf16.msra.mxu0 0
    %148 = vmatprep.subr.bf16.mxu0 0
    %149 = vmatpush1.bf16.msra.mxu0 0
    %150 = vmatprep.subr.bf16.mxu0 0
    %151 = vmatpush1.bf16.msra.mxu0 0
    %152 = vmatprep.subr.bf16.mxu0 0
    %153 = vmatpush1.bf16.msra.mxu0 0
    %154 = vmatprep.subr.bf16.mxu0 0
    %155 = vmatpush1.bf16.msra.mxu0 0
    %156 = vmatprep.subr.bf16.mxu0 0
    %157 = vmatpush1.bf16.msra.mxu0 0
    %158 = vmatprep.subr.bf16.mxu0 0
    %159 = vmatpush1.bf16.msra.mxu0 0
    %160 = vmatprep.subr.bf16.mxu0 0
    %161 = vmatpush1.bf16.msra.mxu0 0
    %162 = vmatprep.subr.bf16.mxu0 0
    %163 = vmatpush1.bf16.msra.mxu0 0
    %164 = vmatprep.mubr.bf16.mxu0 0
    %165 = vmatmul.mubr.bf16.gmra.mrb[0].mxu0 %v127
    %v166 = vpop.f32.mrb[0].mxu0
    %v167 = vadd.f32 0.0, %v166
    %v168 = vpop.f32.mrb[0].mxu0
    %v169 = vpop.f32.mrb[0].mxu0
    %v170 = vadd.f32 0.0, %v169
    %v171 = vpop.f32.mrb[0].mxu0
    %172 = vmatprep.mubr.bf16.mxu0 0
    %173 = vmatmul.mubr.bf16.gmra.mrb[0].mxu0 %v130
    %v174 = vpop.f32.mrb[0].mxu0
    %v175 = vadd.f32 0.0, %v174
    %v176 = vpop.f32.mrb[0].mxu0
    %v177 = vpop.f32.mrb[0].mxu0
    %v178 = vadd.f32 0.0, %v177
    %v179 = vpop.f32.mrb[0].mxu0
    %180 = vdwg.mxu0
    %v181 = vpack.c.bf16 %v170, %v167
    %v182 = vpack.c.bf16 %v178, %v175
    %v183 = vld [vmem:[#allocation7] sm:$0xf]
    %v184 = vld [vmem:[#allocation7 + $0x4] sm:$0xf]
    %v185 = vld [vmem:[#allocation7 + $0x8] sm:$0xf]
    %v186 = vld [vmem:[#allocation7 + $0xc] sm:$0xf]
    %v187 = vld [vmem:[#allocation7 + $0x10] sm:$0xf]
    %v188 = vld [vmem:[#allocation7 + $0x14] sm:$0xf]
    %v189 = vld [vmem:[#allocation7 + $0x18] sm:$0xf]
    %v190 = vld [vmem:[#allocation7 + $0x1c] sm:$0xf]
    %v191 = vld [vmem:[#allocation7 + $0x20] sm:$0xf]
    %v192 = vld [vmem:[#allocation7 + $0x24] sm:$0xf]
    %v193 = vld [vmem:[#allocation7 + $0x28] sm:$0xf]
    %v194 = vld [vmem:[#allocation7 + $0x2c] sm:$0xf]
    %v195 = vld [vmem:[#allocation7 + $0x30] sm:$0xf]
    %v196 = vld [vmem:[#allocation7 + $0x34] sm:$0xf]
    %v197 = vld [vmem:[#allocation7 + $0x38] sm:$0xf]
    %v198 = vld [vmem:[#allocation7 + $0x3c] sm:$0xf]
    %v199 = vld [vmem:[#allocation7 + $0x40] sm:$0xf]
    %v200 = vld [vmem:[#allocation7 + $0x44] sm:$0xf]
    %v201 = vld [vmem:[#allocation7 + $0x48] sm:$0xf]
    %v202 = vld [vmem:[#allocation7 + $0x4c] sm:$0xf]
    %v203 = vld [vmem:[#allocation7 + $0x50] sm:$0xf]
    %v204 = vld [vmem:[#allocation7 + $0x54] sm:$0xf]
    %v205 = vld [vmem:[#allocation7 + $0x58] sm:$0xf]
    %v206 = vld [vmem:[#allocation7 + $0x5c] sm:$0xf]
    %v207 = vld [vmem:[#allocation7 + $0x60] sm:$0xf]
    %v208 = vld [vmem:[#allocation7 + $0x64] sm:$0xf]
    %v209 = vld [vmem:[#allocation7 + $0x68] sm:$0xf]
    %v210 = vld [vmem:[#allocation7 + $0x6c] sm:$0xf]
    %v211 = vld [vmem:[#allocation7 + $0x70] sm:$0xf]
    %v212 = vld [vmem:[#allocation7 + $0x74] sm:$0xf]
    %v213 = vld [vmem:[#allocation7 + $0x78] sm:$0xf]
    %v214 = vld [vmem:[#allocation7 + $0x7c] sm:$0xf]
    %v215 = vld [vmem:[%s3] sm:$0x1]
    %v217 = vlaneseq
    %v218 = vshrl.u32 %v217, 7
    %v219 = vsub.s32 0, %v218
    %v220 = vrot.slane %v215, %v219
    %v254 = vunpack.c.l.b16 %v183
    %v255 = vunpack.c.l.b16 %v184
    %v256 = vunpack.c.l.b16 %v185
    %v257 = vunpack.c.l.b16 %v186
    %v258 = vunpack.c.l.b16 %v187
    %v259 = vunpack.c.l.b16 %v188
    %v260 = vunpack.c.l.b16 %v189
    %v261 = vunpack.c.l.b16 %v190
    %v262 = vunpack.c.l.b16 %v191
    %v263 = vunpack.c.l.b16 %v192
    %v264 = vunpack.c.l.b16 %v193
    %v265 = vunpack.c.l.b16 %v194
    %v266 = vunpack.c.l.b16 %v195
    %v267 = vunpack.c.l.b16 %v196
    %v268 = vunpack.c.l.b16 %v197
    %v269 = vunpack.c.l.b16 %v198
    %v270 = vunpack.c.l.b16 %v199
    %v271 = vunpack.c.l.b16 %v200
    %v272 = vunpack.c.l.b16 %v201
    %v273 = vunpack.c.l.b16 %v202
    %v274 = vunpack.c.l.b16 %v203
    %v275 = vunpack.c.l.b16 %v204
    %v276 = vunpack.c.l.b16 %v205
    %v277 = vunpack.c.l.b16 %v206
    %v278 = vunpack.c.l.b16 %v207
    %v279 = vunpack.c.l.b16 %v208
    %v280 = vunpack.c.l.b16 %v209
    %v281 = vunpack.c.l.b16 %v210
    %v282 = vunpack.c.l.b16 %v211
    %v283 = vunpack.c.l.b16 %v212
    %v284 = vunpack.c.l.b16 %v213
    %v285 = vunpack.c.l.b16 %v214
    %v286 = vpack.c.b16 %v255, %v254
    %v287 = vpack.c.b16 %v257, %v256
    %v288 = vpack.c.b16 %v259, %v258
    %v289 = vpack.c.b16 %v261, %v260
    %v290 = vpack.c.b16 %v263, %v262
    %v291 = vpack.c.b16 %v265, %v264
    %v292 = vpack.c.b16 %v267, %v266
    %v293 = vpack.c.b16 %v269, %v268
    %v294 = vpack.c.b16 %v271, %v270
    %v295 = vpack.c.b16 %v273, %v272
    %v296 = vpack.c.b16 %v275, %v274
    %v297 = vpack.c.b16 %v277, %v276
    %v298 = vpack.c.b16 %v279, %v278
    %v299 = vpack.c.b16 %v281, %v280
    %v300 = vpack.c.b16 %v283, %v282
    %v301 = vpack.c.b16 %v285, %v284
    %318 = vmatprep.subr.bf16.mxu0 0
    %319 = vmatpush1.bf16.msra.mxu0 %v286
    %320 = vmatprep.subr.bf16.mxu0 0
    %321 = vmatpush1.bf16.msra.mxu0 %v287
    %322 = vmatprep.subr.bf16.mxu0 0
    %323 = vmatpush1.bf16.msra.mxu0 %v288
    %324 = vmatprep.subr.bf16.mxu0 0
    %325 = vmatpush1.bf16.msra.mxu0 %v289
    %326 = vmatprep.subr.bf16.mxu0 0
    %327 = vmatpush1.bf16.msra.mxu0 %v290
    %328 = vmatprep.subr.bf16.mxu0 0
    %329 = vmatpush1.bf16.msra.mxu0 %v291
    %330 = vmatprep.subr.bf16.mxu0 0
    %331 = vmatpush1.bf16.msra.mxu0 %v292
    %332 = vmatprep.subr.bf16.mxu0 0
    %333 = vmatpush1.bf16.msra.mxu0 %v293
    %334 = vmatprep.subr.bf16.mxu0 0
    %335 = vmatpush1.bf16.msra.mxu0 %v294
    %336 = vmatprep.subr.bf16.mxu0 0
    %337 = vmatpush1.bf16.msra.mxu0 %v295
    %338 = vmatprep.subr.bf16.mxu0 0
    %339 = vmatpush1.bf16.msra.mxu0 %v296
    %340 = vmatprep.subr.bf16.mxu0 0
    %341 = vmatpush1.bf16.msra.mxu0 %v297
    %342 = vmatprep.subr.bf16.mxu0 0
    %343 = vmatpush1.bf16.msra.mxu0 %v298
    %344 = vmatprep.subr.bf16.mxu0 0
    %345 = vmatpush1.bf16.msra.mxu0 %v299
    %346 = vmatprep.subr.bf16.mxu0 0
    %347 = vmatpush1.bf16.msra.mxu0 %v300
    %348 = vmatprep.subr.bf16.mxu0 0
    %349 = vmatpush1.bf16.msra.mxu0 %v301
    %350 = vmatprep.mubr.bf16.mxu0 %v181
    %351 = vmatmul.mubr.bf16.gmra.mrb[0].mxu0 %v107
    %v352 = vpop.f32.mrb[0].mxu0
    %v353 = vadd.f32 %v220, %v352
    %v354 = vpop.f32.mrb[0].mxu0
    %v355 = vpop.f32.mrb[0].mxu0
    %v356 = vadd.f32 %v220, %v355
    %v357 = vpop.f32.mrb[0].mxu0
    %358 = vmatprep.mubr.bf16.mxu0 %v182
    %359 = vmatmul.mubr.bf16.gmra.mrb[0].mxu0 %v108
    %v360 = vpop.f32.mrb[0].mxu0
    %v361 = vadd.f32 %v220, %v360
    %v362 = vpop.f32.mrb[0].mxu0
    %v363 = vpop.f32.mrb[0].mxu0
    %v364 = vadd.f32 %v220, %v363
    %v365 = vpop.f32.mrb[0].mxu0
    %366 = vdwg.mxu0
    %v367 = vmax.f32 %v353, 0.0
    %v368 = vmax.f32 %v356, 0.0
    %v369 = vmax.f32 %v361, 0.0
    %v370 = vmax.f32 %v364, 0.0
    %v371 = vld [vmem:[#allocation8] sm:$0xff]
    %v372 = vld [vmem:[#allocation8 + $0x8] sm:$0xff]
    %v373 = vld [vmem:[#allocation8 + $0x10] sm:$0xff]
    %v374 = vld [vmem:[#allocation8 + $0x18] sm:$0xff]
    %v375 = vmul.f32 %v367, %v371
    %v376 = vmul.f32 %v368, %v372
    %v377 = vmul.f32 %v369, %v373
    %v378 = vmul.f32 %v370, %v374
    %v379 = vpack.c.bf16 %v376, %v375
    %v380 = vpack.c.bf16 %v378, %v377
    %v381 = vld [vmem:[%s5] sm:$0xf]
    %v382 = vld [vmem:[%s5 + $0x4] sm:$0xf]
    %v385 = vunpack.c.l.b16 %v381
    %v386 = vunpack.c.l.b16 %v382
    %v387 = vpack.c.b16 %v386, %v385
    %vm388 = vcmask 261120
    %v390 = vsel %vm388, %v387, 0
    %392 = vmatprep.subr.bf16.mxu0 0
    %393 = vmatpush1.bf16.msra.mxu0 %v379
    %394 = vmatprep.subr.bf16.mxu0 0
    %395 = vmatpush1.bf16.msra.mxu0 %v380
    %396 = vmatprep.subr.bf16.mxu0 0
    %397 = vmatpush1.bf16.msra.mxu0 0
    %398 = vmatprep.subr.bf16.mxu0 0
    %399 = vmatpush1.bf16.msra.mxu0 0
    %400 = vmatprep.subr.bf16.mxu0 0
    %401 = vmatpush1.bf16.msra.mxu0 0
    %402 = vmatprep.subr.bf16.mxu0 0
    %403 = vmatpush1.bf16.msra.mxu0 0
    %404 = vmatprep.subr.bf16.mxu0 0
    %405 = vmatpush1.bf16.msra.mxu0 0
    %406 = vmatprep.subr.bf16.mxu0 0
    %407 = vmatpush1.bf16.msra.mxu0 0
    %408 = vmatprep.subr.bf16.mxu0 0
    %409 = vmatpush1.bf16.msra.mxu0 0
    %410 = vmatprep.subr.bf16.mxu0 0
    %411 = vmatpush1.bf16.msra.mxu0 0
    %412 = vmatprep.subr.bf16.mxu0 0
    %413 = vmatpush1.bf16.msra.mxu0 0
    %414 = vmatprep.subr.bf16.mxu0 0
    %415 = vmatpush1.bf16.msra.mxu0 0
    %416 = vmatprep.subr.bf16.mxu0 0
    %417 = vmatpush1.bf16.msra.mxu0 0
    %418 = vmatprep.subr.bf16.mxu0 0
    %419 = vmatpush1.bf16.msra.mxu0 0
    %420 = vmatprep.subr.bf16.mxu0 0
    %421 = vmatpush1.bf16.msra.mxu0 0
    %422 = vmatprep.subr.bf16.mxu0 0
    %423 = vmatpush1.bf16.msra.mxu0 0
    %424 = vmatprep.mubr.bf16.mxu0 0
    %425 = vmatmul.mubr.bf16.gmra.mrb[0].mxu0 %v390
    %v426 = vpop.f32.mrb[0].mxu0
    %v427 = vadd.f32 0.0, %v426
    %v428 = vpop.f32.mrb[0].mxu0
    %v429 = vpop.f32.mrb[0].mxu0
    %v430 = vadd.f32 0.0, %v429
    %v431 = vpop.f32.mrb[0].mxu0
    %432 = vdwg.mxu0
    %v433 = vpack.c.bf16 %v430, %v427
    %v434 = vld [vmem:[#allocation10] sm:$0xf]
    %v435 = vld [vmem:[#allocation10 + $0x4] sm:$0xf]
    %v436 = vld [vmem:[#allocation10 + $0x8] sm:$0xf]
    %v437 = vld [vmem:[#allocation10 + $0xc] sm:$0xf]
    %v438 = vld [vmem:[#allocation10 + $0x10] sm:$0xf]
    %v439 = vld [vmem:[#allocation10 + $0x14] sm:$0xf]
    %v440 = vld [vmem:[#allocation10 + $0x18] sm:$0xf]
    %v441 = vld [vmem:[#allocation10 + $0x1c] sm:$0xf]
    %v442 = vld [vmem:[#allocation10 + $0x20] sm:$0xf]
    %v443 = vld [vmem:[#allocation10 + $0x24] sm:$0xf]
    %v444 = vld [vmem:[#allocation10 + $0x28] sm:$0xf]
    %v445 = vld [vmem:[#allocation10 + $0x2c] sm:$0xf]
    %v446 = vld [vmem:[#allocation10 + $0x30] sm:$0xf]
    %v447 = vld [vmem:[#allocation10 + $0x34] sm:$0xf]
    %v448 = vld [vmem:[#allocation10 + $0x38] sm:$0xf]
    %v449 = vld [vmem:[#allocation10 + $0x3c] sm:$0xf]
    %v450 = vld [vmem:[#allocation10 + $0x40] sm:$0xf]
    %v451 = vld [vmem:[#allocation10 + $0x44] sm:$0xf]
    %v452 = vld [vmem:[#allocation10 + $0x48] sm:$0xf]
    %v453 = vld [vmem:[#allocation10 + $0x4c] sm:$0xf]
    %v454 = vld [vmem:[#allocation10 + $0x50] sm:$0xf]
    %v455 = vld [vmem:[#allocation10 + $0x54] sm:$0xf]
    %v456 = vld [vmem:[#allocation10 + $0x58] sm:$0xf]
    %v457 = vld [vmem:[#allocation10 + $0x5c] sm:$0xf]
    %v458 = vld [vmem:[#allocation10 + $0x60] sm:$0xf]
    %v459 = vld [vmem:[#allocation10 + $0x64] sm:$0xf]
    %v460 = vld [vmem:[#allocation10 + $0x68] sm:$0xf]
    %v461 = vld [vmem:[#allocation10 + $0x6c] sm:$0xf]
    %v462 = vld [vmem:[#allocation10 + $0x70] sm:$0xf]
    %v463 = vld [vmem:[#allocation10 + $0x74] sm:$0xf]
    %v464 = vld [vmem:[#allocation10 + $0x78] sm:$0xf]
    %v465 = vld [vmem:[#allocation10 + $0x7c] sm:$0xf]
    %v466 = vld [vmem:[%s7] sm:$0x1]
    %v468 = vlaneseq
    %v469 = vshrl.u32 %v468, 7
    %v470 = vsub.s32 0, %v469
    %v471 = vrot.slane %v466, %v470
    %v505 = vunpack.c.l.b16 %v434
    %v506 = vunpack.c.l.b16 %v435
    %v507 = vunpack.c.l.b16 %v436
    %v508 = vunpack.c.l.b16 %v437
    %v509 = vunpack.c.l.b16 %v438
    %v510 = vunpack.c.l.b16 %v439
    %v511 = vunpack.c.l.b16 %v440
    %v512 = vunpack.c.l.b16 %v441
    %v513 = vunpack.c.l.b16 %v442
    %v514 = vunpack.c.l.b16 %v443
    %v515 = vunpack.c.l.b16 %v444
    %v516 = vunpack.c.l.b16 %v445
    %v517 = vunpack.c.l.b16 %v446
    %v518 = vunpack.c.l.b16 %v447
    %v519 = vunpack.c.l.b16 %v448
    %v520 = vunpack.c.l.b16 %v449
    %v521 = vunpack.c.l.b16 %v450
    %v522 = vunpack.c.l.b16 %v451
    %v523 = vunpack.c.l.b16 %v452
    %v524 = vunpack.c.l.b16 %v453
    %v525 = vunpack.c.l.b16 %v454
    %v526 = vunpack.c.l.b16 %v455
    %v527 = vunpack.c.l.b16 %v456
    %v528 = vunpack.c.l.b16 %v457
    %v529 = vunpack.c.l.b16 %v458
    %v530 = vunpack.c.l.b16 %v459
    %v531 = vunpack.c.l.b16 %v460
    %v532 = vunpack.c.l.b16 %v461
    %v533 = vunpack.c.l.b16 %v462
    %v534 = vunpack.c.l.b16 %v463
    %v535 = vunpack.c.l.b16 %v464
    %v536 = vunpack.c.l.b16 %v465
    %v537 = vpack.c.b16 %v506, %v505
    %v538 = vpack.c.b16 %v508, %v507
    %v539 = vpack.c.b16 %v510, %v509
    %v540 = vpack.c.b16 %v512, %v511
    %v541 = vpack.c.b16 %v514, %v513
    %v542 = vpack.c.b16 %v516, %v515
    %v543 = vpack.c.b16 %v518, %v517
    %v544 = vpack.c.b16 %v520, %v519
    %v545 = vpack.c.b16 %v522, %v521
    %v546 = vpack.c.b16 %v524, %v523
    %v547 = vpack.c.b16 %v526, %v525
    %v548 = vpack.c.b16 %v528, %v527
    %v549 = vpack.c.b16 %v530, %v529
    %v550 = vpack.c.b16 %v532, %v531
    %v551 = vpack.c.b16 %v534, %v533
    %v552 = vpack.c.b16 %v536, %v535
    %569 = vmatprep.subr.bf16.mxu0 0
    %570 = vmatpush1.bf16.msra.mxu0 %v537
    %571 = vmatprep.subr.bf16.mxu0 0
    %572 = vmatpush1.bf16.msra.mxu0 %v538
    %573 = vmatprep.subr.bf16.mxu0 0
    %574 = vmatpush1.bf16.msra.mxu0 %v539
    %575 = vmatprep.subr.bf16.mxu0 0
    %576 = vmatpush1.bf16.msra.mxu0 %v540
    %577 = vmatprep.subr.bf16.mxu0 0
    %578 = vmatpush1.bf16.msra.mxu0 %v541
    %579 = vmatprep.subr.bf16.mxu0 0
    %580 = vmatpush1.bf16.msra.mxu0 %v542
    %581 = vmatprep.subr.bf16.mxu0 0
    %582 = vmatpush1.bf16.msra.mxu0 %v543
    %583 = vmatprep.subr.bf16.mxu0 0
    %584 = vmatpush1.bf16.msra.mxu0 %v544
    %585 = vmatprep.subr.bf16.mxu0 0
    %586 = vmatpush1.bf16.msra.mxu0 %v545
    %587 = vmatprep.subr.bf16.mxu0 0
    %588 = vmatpush1.bf16.msra.mxu0 %v546
    %589 = vmatprep.subr.bf16.mxu0 0
    %590 = vmatpush1.bf16.msra.mxu0 %v547
    %591 = vmatprep.subr.bf16.mxu0 0
    %592 = vmatpush1.bf16.msra.mxu0 %v548
    %593 = vmatprep.subr.bf16.mxu0 0
    %594 = vmatpush1.bf16.msra.mxu0 %v549
    %595 = vmatprep.subr.bf16.mxu0 0
    %596 = vmatpush1.bf16.msra.mxu0 %v550
    %597 = vmatprep.subr.bf16.mxu0 0
    %598 = vmatpush1.bf16.msra.mxu0 %v551
    %599 = vmatprep.subr.bf16.mxu0 0
    %600 = vmatpush1.bf16.msra.mxu0 %v552
    %601 = vmatprep.mubr.bf16.mxu0 %v433
    %602 = vmatmul.mubr.bf16.gmra.mrb[0].mxu0 %v379
    %v603 = vpop.f32.mrb[0].mxu0
    %v604 = vadd.f32 %v471, %v603
    %v605 = vpop.f32.mrb[0].mxu0
    %v606 = vpop.f32.mrb[0].mxu0
    %v607 = vadd.f32 %v471, %v606
    %v608 = vpop.f32.mrb[0].mxu0
    %609 = vdwg.mxu0
    %610 = vst [vmem:[#allocation11] sm:$0xff] %v604
    %611 = vst [vmem:[#allocation11 + $0x8] sm:$0xff] %v607
    // Predicated region
    $region54: #{_fused_forward.1} parent=1 // pred_check
      _
    $region55: #{_fused_forward.1} parent=1 // pred_check_branch
      %613 = sbr.rel (0) target = $region57
    $region56: #{_fused_forward.1} parent=1 // pred_region
      %s615 = ssub.s32 256, 256
      %616 = vsyncadd [#allocation4], %s615
      %s617 = sshll.u32 [#allocation11], 4
      %s618 = int_to_ptr.vmem [resolvable:$true] %s617
      %623 = dma.vmem_to_hbm [thread:$0]  %s618, 256, %s8, [#allocation4], 128, 128, 8
    $region57: #{_fused_forward.1} parent=1 // pred_fallthru
      _
    // Predicated region
    $region58: #{_fused_forward.1} parent=1 // pred_check
      _
    $region59: #{_fused_forward.1} parent=1 // pred_check_branch
      %625 = sbr.rel (0) target = $region61
    $region60: #{_fused_forward.1} parent=1 // pred_region
      %626 = dma.done [#allocation4], 256
    $region61: #{_fused_forward.1} parent=1 // pred_fallthru
      _
    %627 = vsyncpa [#allocation3], 1
    %628 = vsyncpa [#allocation6], 1
    %629 = vsyncpa [#allocation9], 1
    %630 = vsyncpa [#allocation4], 1

</llo_original>
